<compile_context>
chip_gen: v7x
topology: tpu7x:2x2x1
jax: 0.10.0
libtpu: 0.0.40
codegen_flags: <defaults>
</compile_context>

<pallas_src>
import jax
import jax.numpy as jnp
from jax.experimental import pallas as pl
from jax.experimental.pallas import tpu as pltpu

_LANE = 128


def _hswish_kernel(x_ref, o_ref):
    x = x_ref[...]
    # relu6(x + 3) = clamp(x + 3, 0, 6); weak-typed literals keep bf16 in bf16.
    r6 = jnp.minimum(jnp.maximum(x + 3.0, 0.0), 6.0)
    o_ref[...] = (x * r6 * (1.0 / 6.0)).astype(o_ref.dtype)


def _hswish_jnp(x):
    # Plain-XLA path used only for the <128-element ragged tail (or tensors
    # smaller than one lane row), where a kernel launch is not worth it.
    return (x * jnp.clip(x + 3.0, 0.0, 6.0) * (1.0 / 6.0)).astype(x.dtype)


def _row_tile(rows, lanes, itemsize, pack, target_block_bytes):
    """Rows per block: ~target_block_bytes, but >= 4 even grid steps if large."""
    total_bytes = rows * lanes * itemsize
    # Small arrays: one full-array block (block_shape == array dims is always
    # legal); there is nothing for the pipeline / second core to hide.
    if total_bytes <= (1 << 20):
        return rows
    # Force >= 4 grid steps and an even step count so DMA/compute pipelining
    # engages and v7x's two TensorCores split the grid evenly.
    steps = max(4, pl.cdiv(total_bytes, target_block_bytes))
    if steps % 2:
        steps += 1
    tr = pl.cdiv(rows, steps)
    # Round up to the dtype's sublane packing so every full block stays
    # (pack, 128)-aligned (wide unmasked stores); a ragged last grid block is
    # handled by Pallas with a masked store.
    tr = max(pack, pl.cdiv(tr, pack) * pack)
    return min(tr, rows)


def _hswish_pallas_flat(x_flat, *, target_block_bytes, vmem_limit_bytes,
                        alias_input):
    """hswish over a flat array whose length is a multiple of 128."""
    n = x_flat.shape[0]
    dtype = x_flat.dtype
    itemsize = jnp.dtype(dtype).itemsize
    # Sublane packing: 8 rows for 32-bit, 16 for 16-bit, 32 for 8-bit dtypes.
    pack = 8 * max(1, 4 // itemsize)

    # Widest lane count that divides n exactly -> pure (free) reshape, and
    # wide unmasked lane-dense stores.
    lanes = _LANE
    for cand in (1024, 512, 256):
        if n % cand == 0:
            lanes = cand
            break
    rows = n // lanes
    x2d = x_flat.reshape(rows, lanes)

    tr = _row_tile(rows, lanes, itemsize, pack, target_block_bytes)
    grid = (pl.cdiv(rows, tr),)

    out2d = pl.pallas_call(
        _hswish_kernel,
        out_shape=jax.ShapeDtypeStruct((rows, lanes), dtype),
        grid_spec=pltpu.PrefetchScalarGridSpec(
            num_scalar_prefetch=0,
            grid=grid,
            in_specs=[pl.BlockSpec((tr, lanes), lambda i: (i, 0))],
            out_specs=pl.BlockSpec((tr, lanes), lambda i: (i, 0)),
        ),
        compiler_params=pltpu.CompilerParams(
            dimension_semantics=("parallel",),
            vmem_limit_bytes=vmem_limit_bytes),
        cost_estimate=pl.CostEstimate(
            flops=5 * n,
            transcendentals=0,
            bytes_accessed=2 * n * itemsize),
        input_output_aliases=({0: 0} if alias_input else {}),
    )(x2d)
    return out2d.reshape(-1)


def hswish(x, *, target_block_bytes=4 * 1024 * 1024,
           vmem_limit_bytes=32 * 1024 * 1024, alias_input=False):
    """Elementwise hard-swish matching PyTorch _Hswish.forward.

    Any shape / float dtype. The 128-aligned prefix of the flat tensor goes
    through a lane-dense Pallas kernel (1 HBM read + 1 write); a <128-element
    ragged tail, if any, is computed with plain jnp.  Set alias_input=True
    (and donate x at the jit boundary) to reuse the input HBM buffer.
    """
    orig_shape = x.shape
    n = x.size
    if n == 0:
        return x

    x_flat = x.reshape(-1)              # free flat view
    n_main = (n // _LANE) * _LANE

    if n_main == 0:
        # Tiny tensor (< 128 elements): not worth a kernel launch.
        return _hswish_jnp(x)

    kw = dict(target_block_bytes=target_block_bytes,
              vmem_limit_bytes=vmem_limit_bytes,
              alias_input=alias_input)

    if n_main == n:
        return _hswish_pallas_flat(x_flat, **kw).reshape(orig_shape)

    # Ragged total size: Pallas on the aligned prefix, jnp on the short tail.
    y_main = _hswish_pallas_flat(x_flat[:n_main], **kw)
    y_tail = _hswish_jnp(x_flat[n_main:])
    return jnp.concatenate([y_main, y_tail]).reshape(orig_shape)


def hswish_ref(x):
    return x * jnp.clip(x + 3.0, 0.0, 6.0) / 6.0


if __name__ == "__main__":
    key = jax.random.PRNGKey(0)
    k0, k1, k2, k3 = jax.random.split(key, 4)

    # 1) NCHW activation, small shape consistent with a conv-net input.
    x = jax.random.normal(k0, (2, 4, 16, 16), dtype=jnp.float32) * 4.0
    y = hswish(x)
    jax.block_until_ready(y)
    assert y.shape == x.shape and y.dtype == x.dtype
    assert jnp.allclose(y, hswish_ref(x), atol=1e-6, rtol=1e-6)

    # 2) Larger tensor exercising the multi-step (>=4-block, pipelined) grid.
    x_big = jax.random.normal(k1, (2, 16, 128, 128), dtype=jnp.float32) * 4.0
    y_big = hswish(x_big)
    jax.block_until_ready(y_big)
    assert jnp.allclose(y_big, hswish_ref(x_big), atol=1e-5, rtol=1e-6)

    # 3) Ragged f32 size (n % 128 != 0, n > 128): Pallas prefix + jnp tail.
    x_rag = jax.random.normal(k2, (5, 77), dtype=jnp.float32) * 4.0
    y_rag = hswish(x_rag)
    jax.block_until_ready(y_rag)
    assert y_rag.shape == x_rag.shape and y_rag.dtype == x_rag.dtype
    assert jnp.allclose(y_rag, hswish_ref(x_rag), atol=1e-6, rtol=1e-6)

    # 4) Small odd-sized bf16 tensor (< 128 elements -> pure tail path).
    x_bf = jax.random.normal(k3, (3, 5, 7), dtype=jnp.bfloat16)
    y_bf = hswish(x_bf)
    jax.block_until_ready(y_bf)
    assert y_bf.shape == x_bf.shape and y_bf.dtype == x_bf.dtype
    assert jnp.allclose(y_bf.astype(jnp.float32),
                        hswish_ref(x_bf.astype(jnp.float32)),
                        atol=2e-2, rtol=2e-2)

    print("KERNEL_OK")
</pallas_src>

<mosaic_0001>
module attributes {stable_mosaic.version = 11 : i64} {
  func.func @_hswish_kernel(%arg0: i32, %arg1: memref<2x1024xf32, #tpu.memory_space<vmem>>, %arg2: memref<2x1024xf32, #tpu.memory_space<vmem>>) attributes {dimension_semantics = [#tpu.dimension_semantics<parallel>], iteration_bounds = array<i64: 1>, scalar_prefetch = 0 : i64, scratch_operands = 0 : i64, tpu.core_type = #tpu.core_type<tc>, window_params = [{transform_indices = @transform_0, window_bounds = array<i64: 2, 1024>}, {transform_indices = @transform_1, window_bounds = array<i64: 2, 1024>}]} {
    %c0 = arith.constant 0 : index
    %c0_0 = arith.constant 0 : index
    %0 = vector.load %arg1[%c0, %c0_0] : memref<2x1024xf32, #tpu.memory_space<vmem>>, vector<2x1024xf32>
    %cst = arith.constant 3.000000e+00 : f32
    %1 = vector.broadcast %cst : f32 to vector<2x1024xf32>
    %2 = arith.addf %0, %1 : vector<2x1024xf32>
    %cst_1 = arith.constant 0.000000e+00 : f32
    %3 = vector.broadcast %cst_1 : f32 to vector<2x1024xf32>
    %4 = arith.maximumf %2, %3 : vector<2x1024xf32>
    %cst_2 = arith.constant 6.000000e+00 : f32
    %5 = vector.broadcast %cst_2 : f32 to vector<2x1024xf32>
    %6 = arith.minimumf %4, %5 : vector<2x1024xf32>
    %7 = arith.mulf %0, %6 : vector<2x1024xf32>
    %cst_3 = arith.constant 0.166666672 : f32
    %8 = vector.broadcast %cst_3 : f32 to vector<2x1024xf32>
    %9 = arith.mulf %7, %8 : vector<2x1024xf32>
    %c0_4 = arith.constant 0 : index
    %c0_5 = arith.constant 0 : index
    %10 = vector.load %arg2[%c0_4, %c0_5] : memref<2x1024xf32, #tpu.memory_space<vmem>>, vector<2x1024xf32>
    tpu.vector_store %arg2[%c0_4, %c0_5], %9 {strides = array<i32>} : memref<2x1024xf32, #tpu.memory_space<vmem>>, vector<2x1024xf32>,
    return
  }
  func.func @transform_0(%arg0: i32) -> (i32, i32) {
    %c0_i32 = arith.constant 0 : i32
    %c0_i32_0 = arith.constant 0 : i32
    return %arg0, %c0_i32 : i32, i32
  }
  func.func @transform_1(%arg0: i32) -> (i32, i32) {
    %c0_i32 = arith.constant 0 : i32
    %c0_i32_0 = arith.constant 0 : i32
    return %arg0, %c0_i32 : i32, i32
  }
}

</mosaic_0001>

<llo_original>
// kernel: tpu_custom_call.1
$region0: #{tpu_custom_call.1}
  #allocation0 [shape = 'u32[]', space=smem, size = 0x4, offset = 0x4, fixed_abs, tag = 'smem constant byte address 0x4 - core index']
  #allocation1 [shape = 'u32[144,128]{1,0:T(1,128)}', space=vmem, size = 0x12000, scoped, tag = 'internal scratch']
  %s0 = inlined_call_operand.hbm [shape: f32[2,1024], index: 0, kind: input, shape index: {}]
  %s1 = inlined_call_operand.hbm [shape: f32[2,1024], index: 1, kind: output, shape index: {}]
  %s2 = sld [smem:[#allocation0]]
  $region18: #{tpu_custom_call.1} parent=0
    _
  %s4 = ssub.s32 1, %s2
  %s5 = scalar_select 0, %s4, %s2
  $region1: #{tpu_custom_call.1} parent=0
    #allocation2 [shape = 'u8[8192]{0}', space=vmem, size = 0x2000, scoped, tag = 'input window, operand 0, single buffered']
    #allocation3 [shape = 's32[1]{0}', space=sflag, size = 0x4, scoped, tag = 'scoped memory for tpu_custom_call.1']
    #allocation4 [shape = 's32[1]{0}', space=sflag, size = 0x4, scoped, tag = 'scoped memory for tpu_custom_call.1']
    #allocation5 [shape = 'u8[8192]{0}', space=vmem, size = 0x2000, scoped, tag = 'output window, operand 0, single buffered']
    %6 = vsyncpa [#allocation3], 0
    %7 = vsyncpa [#allocation4], 0
    // Predicated region
    $region2: #{tpu_custom_call.1} parent=1 // pred_check
      _
    $region3: #{tpu_custom_call.1} parent=1 // pred_check_branch
      %9 = sbr.rel (0) target = $region5
    $region4: #{tpu_custom_call.1} parent=1 // pred_region
      %s11 = ssub.s32 256, 256
      %12 = vsyncadd [#allocation3], %s11
      %s14 = sshll.u32 [#allocation2], 4
      %s15 = int_to_ptr.vmem [resolvable:$true] %s14
      %17 = dma.hbm_to_vmem [thread:$0]  %s0, 256, %s15, [#allocation3]
    $region5: #{tpu_custom_call.1} parent=1 // pred_fallthru
      _
    // Predicated region
    $region6: #{tpu_custom_call.1} parent=1 // pred_check
      _
    $region7: #{tpu_custom_call.1} parent=1 // pred_check_branch
      %19 = sbr.rel (0) target = $region9
    $region8: #{tpu_custom_call.1} parent=1 // pred_region
      %20 = dma.done [#allocation3], 256
    $region9: #{tpu_custom_call.1} parent=1 // pred_fallthru
      _
    %v21 = vld [vmem:[#allocation2] sm:$0xff]
    %v22 = vld [vmem:[#allocation2 + $0x8] sm:$0xff]
    %v23 = vadd.f32 %v21, 3.0
    %v24 = vadd.f32 %v22, 3.0
    %v25 = vmax.f32 %v23, 0.0
    %v26 = vmax.f32 %v24, 0.0
    %v27 = vmin.f32 %v25, 6.0
    %v28 = vmin.f32 %v26, 6.0
    %v29 = vmul.f32 %v21, %v27
    %v30 = vmul.f32 %v22, %v28
    %v31 = vmul.f32 %v29, 0.16666667
    %v32 = vmul.f32 %v30, 0.16666667
    %33 = vst [vmem:[#allocation5] sm:$0xff] %v31
    %34 = vst [vmem:[#allocation5 + $0x8] sm:$0xff] %v32
    // Predicated region
    $region10: #{tpu_custom_call.1} parent=1 // pred_check
      _
    $region11: #{tpu_custom_call.1} parent=1 // pred_check_branch
      %36 = sbr.rel (0) target = $region13
    $region12: #{tpu_custom_call.1} parent=1 // pred_region
      %s38 = ssub.s32 256, 256
      %39 = vsyncadd [#allocation4], %s38
      %s41 = sshll.u32 [#allocation5], 4
      %s42 = int_to_ptr.vmem [resolvable:$true] %s41
      %44 = dma.vmem_to_hbm [thread:$0]  %s42, 256, %s1, [#allocation4]
    $region13: #{tpu_custom_call.1} parent=1 // pred_fallthru
      _
    // Predicated region
    $region14: #{tpu_custom_call.1} parent=1 // pred_check
      _
    $region15: #{tpu_custom_call.1} parent=1 // pred_check_branch
      %46 = sbr.rel (0) target = $region17
    $region16: #{tpu_custom_call.1} parent=1 // pred_region
      %47 = dma.done [#allocation4], 256
    $region17: #{tpu_custom_call.1} parent=1 // pred_fallthru
      _
    %48 = vsyncpa [#allocation3], 1
    %49 = vsyncpa [#allocation4], 1

</llo_original>
